<compile_context>
chip_gen: v5e
topology: v5e:2x2
jax: 0.10.0
libtpu: 0.0.40
codegen_flags: <defaults>
</compile_context>

<pallas_src>
import functools

import jax
import jax.numpy as jnp
from jax import lax
from jax.experimental import pallas as pl
from jax.experimental.pallas import tpu as pltpu


# --------------------------------------------------------------------------
# Kernels
# --------------------------------------------------------------------------
def _se_kernel_chw(x_ref, w1t_ref, b1_ref, w2t_ref, b2_ref, o_ref, *,
                   chunk, scale_dtype):
    # x_ref / o_ref: (Bt, C, HW) in the I/O dtype; HW on the lane axis.
    # w1t_ref: (C, Cr) f32 (1/HW folded in) ; b1_ref: (1, Cr)
    # w2t_ref: (Cr, C) f32                  ; b2_ref: (1, C)
    Bt, C, HW = x_ref.shape
    n_chunks = HW // chunk

    # ---- squeeze: elementwise accumulate, single cross-lane reduce ---------
    def pool_body(c, acc):
        start = pl.multiple_of(c * chunk, chunk)
        return acc + x_ref[:, :, pl.ds(start, chunk)].astype(jnp.float32)

    acc = lax.fori_loop(0, n_chunks, pool_body,
                        jnp.zeros((Bt, C, chunk), jnp.float32), unroll=True)
    s = jnp.sum(acc, axis=2)                                      # (Bt, C)

    # ---- excitation: fc1 (mean folded into w1t) -> relu -> fc2 -> sigmoid --
    h = jnp.dot(s, w1t_ref[...],
                preferred_element_type=jnp.float32) + b1_ref[...]  # (Bt, Cr)
    h = jnp.maximum(h, 0.0)
    g = jnp.dot(h, w2t_ref[...],
                preferred_element_type=jnp.float32) + b2_ref[...]  # (Bt, C)
    g = jax.nn.sigmoid(g)

    # ---- scale: hoisted gate broadcast, lane-dense stores -------------------
    gate_b = jnp.broadcast_to(g.astype(scale_dtype)[:, :, None], (Bt, C, chunk))

    @pl.loop(0, n_chunks, unroll=True)
    def _(c):
        start = pl.multiple_of(c * chunk, chunk)
        xc = x_ref[:, :, pl.ds(start, chunk)].astype(scale_dtype)
        o_ref[:, :, pl.ds(start, chunk)] = (xc * gate_b).astype(o_ref.dtype)


def _se_kernel_chlast(x_ref, w1t_ref, b1_ref, w2t_ref, b2_ref, o_ref, *,
                      cchunk, scale_dtype):
    # x_ref / o_ref: (Bt, HW, C) in the I/O dtype; C on the lane axis.
    # Used when HW < 128 (7x7-style maps) and C % 128 == 0.
    Bt, HW, C = x_ref.shape
    n_chunks = C // cchunk

    # ---- squeeze: sublane-axis reduce per lane chunk of C -------------------
    parts = []
    for c in range(n_chunks):                 # static, small trip count
        lo = c * cchunk
        xc = x_ref[:, :, lo:lo + cchunk].astype(jnp.float32)   # (Bt, HW, cchunk)
        parts.append(jnp.sum(xc, axis=1))                       # (Bt, cchunk)
    s = parts[0] if n_chunks == 1 else jnp.concatenate(parts, axis=1)  # (Bt, C)

    h = jnp.dot(s, w1t_ref[...],
                preferred_element_type=jnp.float32) + b1_ref[...]
    h = jnp.maximum(h, 0.0)
    g = jnp.dot(h, w2t_ref[...],
                preferred_element_type=jnp.float32) + b2_ref[...]
    g = jax.nn.sigmoid(g).astype(scale_dtype)                   # (Bt, C)

    # ---- scale: full 128-lane stores; cheap sublane broadcast of the gate ---
    for c in range(n_chunks):
        lo = c * cchunk
        gate_b = jnp.broadcast_to(g[:, None, lo:lo + cchunk], (Bt, HW, cchunk))
        xc = x_ref[:, :, lo:lo + cchunk].astype(scale_dtype)
        o_ref[:, :, lo:lo + cchunk] = (xc * gate_b).astype(o_ref.dtype)


# --------------------------------------------------------------------------
# Sizing helpers
# --------------------------------------------------------------------------
_CHUNK_CAP_BYTES = 96 * 1024  # ~24 live f32 vregs per streamed chunk


def _native_bf16_vpu():
    """v6e / v7x have a native bf16 VPU; v5e and older do not."""
    try:
        kind = jax.devices()[0].device_kind.lower()
    except Exception:
        return True
    return not any(v in kind for v in ("v2", "v3", "v4", "v5"))


def _vmem_capacity_bytes():
    try:
        return int(pltpu.get_tpu_info().vmem_capacity_bytes)
    except Exception:
        return 64 * 1024 * 1024  # conservative (v7x per-TC)


def _pick_lane_chunk(bt, C, HW):
    """HW (lane) chunk to stream; multiple of 128 when possible, sized so the
    streamed chunk (+ accumulator) stays inside the vreg file."""
    if HW % 128 != 0:
        return HW  # lane-sparse fallback (only when C is also lane-unfriendly)
    best = 128
    for cand in (256, 512, 1024):
        if HW % cand == 0 and bt * C * cand * 4 <= _CHUNK_CAP_BYTES:
            best = cand
    return best


def _pick_channel_chunk(bt, C, HW):
    """C (lane) chunk for the channels-last layout (C % 128 == 0 guaranteed)."""
    best = 128
    for cand in (256, 512, 1024):
        if C % cand == 0 and bt * HW * cand * 4 <= _CHUNK_CAP_BYTES:
            best = cand
    if bt * HW * C * 4 <= _CHUNK_CAP_BYTES:
        best = C
    return best


def _pick_batch_tile(B, per_sample_bytes, budget_bytes):
    """Largest divisor of B whose (in+out, double-buffered) tiles fit VMEM,
    preferring an even, >=2-step grid so dual-TC (v7x) chips stay balanced."""
    max_bt = max(1, budget_bytes // (4 * per_sample_bytes))
    fitting = [d for d in range(1, B + 1) if B % d == 0 and d <= max_bt] or [1]
    even_steps = [d for d in fitting if (B // d) >= 2 and (B // d) % 2 == 0]
    if even_steps:
        return max(even_steps)
    multi_steps = [d for d in fitting if (B // d) >= 2]
    if multi_steps:
        return max(multi_steps)
    return max(fitting)


# --------------------------------------------------------------------------
# Wrapper
# --------------------------------------------------------------------------
def se_module(x_nchw, w1, b1, w2, b2):
    """SE gating block.

    x_nchw: (B, C, H, W); w1: (Cr, C, 1, 1); b1: (Cr,); w2: (C, Cr, 1, 1);
    b2: (C,).  Returns x * sigmoid(fc2(relu(fc1(mean_hw(x))))) over (H, W).
    """
    B, C, H, W = x_nchw.shape
    Cr = w1.shape[0]
    HW = H * W
    dtype = x_nchw.dtype
    itemsize = jnp.dtype(dtype).itemsize

    # Fold the 1/HW mean normalization into the first FC weight (kernel sum-pools).
    w1t = (w1.reshape(Cr, C).T / float(HW)).astype(jnp.float32)    # (C, Cr)
    w2t = w2.reshape(C, Cr).T.astype(jnp.float32)                  # (Cr, C)
    b1r = b1.reshape(1, Cr).astype(jnp.float32)
    b2r = b2.reshape(1, C).astype(jnp.float32)

    # bf16 I/O: scale natively in bf16 where the VPU supports it (v6e/v7x);
    # keep the f32 round trip only on v5-and-older.  Pool/FC math is f32 always.
    if jnp.dtype(dtype) == jnp.dtype(jnp.bfloat16) and _native_bf16_vpu():
        scale_dtype = jnp.bfloat16
    else:
        scale_dtype = jnp.float32

    # Layout: channels-last when the spatial extent is lane-unfriendly but C is
    # (late-stage SE blocks, e.g. 7x7 maps with C >= 128).
    channels_last = (HW % 128 != 0) and (C % 128 == 0)

    vmem_cap = _vmem_capacity_bytes()
    vmem_ceiling = (vmem_cap * 7) // 8            # never request above physical
    per_sample = C * HW * itemsize
    budget = int(vmem_ceiling * 0.6)              # headroom for weights/scratch
    bt = _pick_batch_tile(B, per_sample, budget)

    # TODO(synk): if even the bt=1 in+out tiles exceed the VMEM budget (huge
    # C*HW), add a second grid axis tiling HW (partial-sum pool) instead of
    # over-requesting VMEM; not needed at SENet-scale feature maps.

    weight_bytes = 4 * (2 * C * Cr + C + Cr)
    needed = 4 * bt * per_sample + 4 * weight_bytes + (2 << 20)
    vmem_limit = min(max(needed, 8 << 20), vmem_ceiling)

    cost = pl.CostEstimate(
        flops=2 * B * C * HW + 4 * B * C * Cr,
        transcendentals=B * C,
        bytes_accessed=2 * B * C * HW * itemsize + weight_bytes)

    if channels_last:
        # (B, HW, C): C on lanes -> unmasked full-lane stores.
        # TODO(synk): in a full SENet pipeline keep activations channels-last
        # end-to-end; here the wrapper transposes at the boundary.
        x = x_nchw.reshape(B, C, HW).transpose(0, 2, 1)            # (B, HW, C)
        cchunk = _pick_channel_chunk(bt, C, HW)
        kernel = functools.partial(_se_kernel_chlast, cchunk=cchunk,
                                   scale_dtype=scale_dtype)
        block = (bt, HW, C)
    else:
        x = x_nchw.reshape(B, C, HW)                               # (B, C, HW)
        chunk = _pick_lane_chunk(bt, C, HW)
        kernel = functools.partial(_se_kernel_chw, chunk=chunk,
                                   scale_dtype=scale_dtype)
        block = (bt, C, HW)

    out = pl.pallas_call(
        kernel,
        out_shape=jax.ShapeDtypeStruct(x.shape, dtype),
        grid=(B // bt,),
        in_specs=[
            pl.BlockSpec(block, lambda b: (b, 0, 0)),
            pl.BlockSpec((C, Cr), lambda b: (0, 0)),
            pl.BlockSpec((1, Cr), lambda b: (0, 0)),
            pl.BlockSpec((Cr, C), lambda b: (0, 0)),
            pl.BlockSpec((1, C), lambda b: (0, 0)),
        ],
        out_specs=pl.BlockSpec(block, lambda b: (b, 0, 0)),
        input_output_aliases={0: 0},  # in-place channel scale (when x is dead)
        compiler_params=pltpu.CompilerParams(
            dimension_semantics=("parallel",),
            vmem_limit_bytes=int(vmem_limit)),
        cost_estimate=cost,
    )(x, w1t, b1r, w2t, b2r)

    if channels_last:
        out = out.transpose(0, 2, 1)
    return out.reshape(B, C, H, W)


def se_reference(x_nchw, w1, b1, w2, b2):
    # Pure-JAX reference of the PyTorch SE-block forward (f32).
    B, C, H, W = x_nchw.shape
    Cr = w1.shape[0]
    s = jnp.mean(x_nchw, axis=(2, 3))                       # (B, C)
    h = jnp.maximum(s @ w1.reshape(Cr, C).T + b1, 0.0)      # (B, Cr)
    g = jax.nn.sigmoid(h @ w2.reshape(C, Cr).T + b2)        # (B, C)
    return x_nchw * g[:, :, None, None]


if __name__ == "__main__":
    def run_case(B, planes, compress_rate, H, W, dtype, tol):
        Cr = planes // compress_rate
        key = jax.random.PRNGKey(0)
        kx, k1, k2, k3, k4 = jax.random.split(key, 5)

        x = jax.random.normal(kx, (B, planes, H, W), dtype=jnp.float32).astype(dtype)
        w1 = jax.random.normal(k1, (Cr, planes, 1, 1), dtype=jnp.float32) * 0.2
        b1 = jax.random.normal(k2, (Cr,), dtype=jnp.float32) * 0.1
        w2 = jax.random.normal(k3, (planes, Cr, 1, 1), dtype=jnp.float32) * 0.2
        b2 = jax.random.normal(k4, (planes,), dtype=jnp.float32) * 0.1

        ref = se_reference(x.astype(jnp.float32), w1, b1, w2, b2)
        out = jax.block_until_ready(se_module(x, w1, b1, w2, b2))

        assert out.shape == (B, planes, H, W)
        assert out.dtype == dtype
        assert jnp.allclose(out.astype(jnp.float32), ref, atol=tol, rtol=tol), (
            f"mismatch vs reference for dtype={dtype}, shape=({B},{planes},{H},{W})")

    # f32, spatial-major layout (HW = 1024 lane-dense).
    run_case(B=2, planes=8, compress_rate=4, H=32, W=32, dtype=jnp.float32, tol=1e-4)
    # bf16 I/O (bf16-native scale on v6e/v7x, f32 round trip on v5e), HW = 256.
    run_case(B=2, planes=16, compress_rate=4, H=16, W=16, dtype=jnp.bfloat16, tol=3e-2)
    # channels-last layout: late-stage 7x7 map, C = 128 on the lane axis.
    run_case(B=2, planes=128, compress_rate=16, H=7, W=7, dtype=jnp.float32, tol=1e-4)

    print("KERNEL_OK")
</pallas_src>

<mosaic_0001>
module attributes {stable_mosaic.version = 11 : i64} {
  func.func @_se_kernel_chw(%arg0: i32, %arg1: memref<1x8x1024xf32, #tpu.memory_space<vmem>>, %arg2: memref<8x2xf32, #tpu.memory_space<vmem>>, %arg3: memref<1x2xf32, #tpu.memory_space<vmem>>, %arg4: memref<2x8xf32, #tpu.memory_space<vmem>>, %arg5: memref<1x8xf32, #tpu.memory_space<vmem>>, %arg6: memref<1x8x1024xf32, #tpu.memory_space<vmem>>) attributes {dimension_semantics = [#tpu.dimension_semantics<parallel>], iteration_bounds = array<i64: 2>, scalar_prefetch = 0 : i64, scratch_operands = 0 : i64, tpu.core_type = #tpu.core_type<tc>, window_params = [{transform_indices = @transform_0, window_bounds = array<i64: 1, 8, 1024>}, {pipeline_mode = #tpu.pipeline_mode<synchronous>, transform_indices = @transform_1, window_bounds = array<i64: 8, 2>}, {pipeline_mode = #tpu.pipeline_mode<synchronous>, transform_indices = @transform_2, window_bounds = array<i64: 1, 2>}, {pipeline_mode = #tpu.pipeline_mode<synchronous>, transform_indices = @transform_3, window_bounds = array<i64: 2, 8>}, {pipeline_mode = #tpu.pipeline_mode<synchronous>, transform_indices = @transform_4, window_bounds = array<i64: 1, 8>}, {transform_indices = @transform_5, window_bounds = array<i64: 1, 8, 1024>}]} {
    %cst = arith.constant 0.000000e+00 : f32
    %0 = vector.broadcast %cst : f32 to vector<1x8x1024xf32>
    %c0_i32 = arith.constant 0 : i32
    %c1024_i32 = arith.constant 1024 : i32
    %1 = arith.muli %c0_i32, %c1024_i32 : i32
    %2 = tpu.assume_multiple %1, 1024 : i32
    %c0 = arith.constant 0 : index
    %c0_0 = arith.constant 0 : index
    %3 = arith.index_cast %2 : i32 to index
    %4 = vector.load %arg1[%c0, %c0_0, %3] : memref<1x8x1024xf32, #tpu.memory_space<vmem>>, vector<1x8x1024xf32>
    %5 = arith.addf %0, %4 : vector<1x8x1024xf32>
    %c1_i32 = arith.constant 1 : i32
    %cst_1 = arith.constant dense<0.000000e+00> : vector<1x8xf32>
    %6 = vector.multi_reduction <add>, %5, %cst_1 [2] : vector<1x8x1024xf32> to vector<1x8xf32>
    %c0_2 = arith.constant 0 : index
    %c0_3 = arith.constant 0 : index
    %7 = vector.load %arg2[%c0_2, %c0_3] : memref<8x2xf32, #tpu.memory_space<vmem>>, vector<8x2xf32>
    %cst_4 = arith.constant dense<0.000000e+00> : vector<1x2xf32>
    %8 = tpu.matmul %6, %7, %cst_4 {dimension_numbers = #tpu.dot_dimension_numbers<[1], [0], [0], [1], [0, 0, 1, 1], [], []>} : vector<1x8xf32>, vector<8x2xf32>, vector<1x2xf32> -> vector<1x2xf32>
    %c0_5 = arith.constant 0 : index
    %c0_6 = arith.constant 0 : index
    %9 = vector.load %arg3[%c0_5, %c0_6] : memref<1x2xf32, #tpu.memory_space<vmem>>, vector<1x2xf32>
    %10 = arith.addf %8, %9 : vector<1x2xf32>
    %cst_7 = arith.constant 0.000000e+00 : f32
    %11 = vector.broadcast %cst_7 : f32 to vector<1x2xf32>
    %12 = arith.maximumf %10, %11 : vector<1x2xf32>
    %c0_8 = arith.constant 0 : index
    %c0_9 = arith.constant 0 : index
    %13 = vector.load %arg4[%c0_8, %c0_9] : memref<2x8xf32, #tpu.memory_space<vmem>>, vector<2x8xf32>
    %cst_10 = arith.constant dense<0.000000e+00> : vector<1x8xf32>
    %14 = tpu.matmul %12, %13, %cst_10 {dimension_numbers = #tpu.dot_dimension_numbers<[1], [0], [0], [1], [0, 0, 1, 1], [], []>} : vector<1x2xf32>, vector<2x8xf32>, vector<1x8xf32> -> vector<1x8xf32>
    %c0_11 = arith.constant 0 : index
    %c0_12 = arith.constant 0 : index
    %15 = vector.load %arg5[%c0_11, %c0_12] : memref<1x8xf32, #tpu.memory_space<vmem>>, vector<1x8xf32>
    %16 = arith.addf %14, %15 : vector<1x8xf32>
    %17 = arith.negf %16 : vector<1x8xf32>
    %18 = math.exp %17 : vector<1x8xf32>
    %cst_13 = arith.constant 1.000000e+00 : f32
    %19 = vector.broadcast %cst_13 : f32 to vector<1x8xf32>
    %20 = arith.addf %19, %18 : vector<1x8xf32>
    %21 = arith.divf %19, %20 : vector<1x8xf32>
    %22 = vector.shape_cast %21 : vector<1x8xf32> to vector<1x8x1xf32>
    %23 = vector.shape_cast %22 : vector<1x8x1xf32> to vector<1x8x1xf32>
    %24 = vector.broadcast %23 : vector<1x8x1xf32> to vector<1x8x1024xf32>
    %c0_i32_14 = arith.constant 0 : i32
    %c1_i32_15 = arith.constant 1 : i32
    %25 = arith.muli %c0_i32_14, %c1_i32_15 : i32
    %c0_i32_16 = arith.constant 0 : i32
    %26 = arith.addi %c0_i32_16, %25 : i32
    %c1024_i32_17 = arith.constant 1024 : i32
    %27 = arith.muli %26, %c1024_i32_17 : i32
    %28 = tpu.assume_multiple %27, 1024 : i32
    %c0_18 = arith.constant 0 : index
    %c0_19 = arith.constant 0 : index
    %29 = arith.index_cast %28 : i32 to index
    %30 = vector.load %arg1[%c0_18, %c0_19, %29] : memref<1x8x1024xf32, #tpu.memory_space<vmem>>, vector<1x8x1024xf32>
    %31 = arith.mulf %30, %24 : vector<1x8x1024xf32>
    %c0_20 = arith.constant 0 : index
    %c0_21 = arith.constant 0 : index
    %32 = arith.index_cast %28 : i32 to index
    %33 = vector.load %arg6[%c0_20, %c0_21, %32] : memref<1x8x1024xf32, #tpu.memory_space<vmem>>, vector<1x8x1024xf32>
    tpu.vector_store %arg6[%c0_20, %c0_21, %32], %31 {strides = array<i32>} : memref<1x8x1024xf32, #tpu.memory_space<vmem>>, vector<1x8x1024xf32>,
    %c1_i32_22 = arith.constant 1 : i32
    return
  }
  func.func @transform_0(%arg0: i32) -> (i32, i32, i32) {
    %c0_i32 = arith.constant 0 : i32
    %c0_i32_0 = arith.constant 0 : i32
    %c0_i32_1 = arith.constant 0 : i32
    return %arg0, %c0_i32, %c0_i32_0 : i32, i32, i32
  }
  func.func @transform_1(%arg0: i32) -> (i32, i32) {
    %c0_i32 = arith.constant 0 : i32
    %c0_i32_0 = arith.constant 0 : i32
    %c0_i32_1 = arith.constant 0 : i32
    return %c0_i32, %c0_i32_0 : i32, i32
  }
  func.func @transform_2(%arg0: i32) -> (i32, i32) {
    %c0_i32 = arith.constant 0 : i32
    %c0_i32_0 = arith.constant 0 : i32
    %c0_i32_1 = arith.constant 0 : i32
    return %c0_i32, %c0_i32_0 : i32, i32
  }
  func.func @transform_3(%arg0: i32) -> (i32, i32) {
    %c0_i32 = arith.constant 0 : i32
    %c0_i32_0 = arith.constant 0 : i32
    %c0_i32_1 = arith.constant 0 : i32
    return %c0_i32, %c0_i32_0 : i32, i32
  }
  func.func @transform_4(%arg0: i32) -> (i32, i32) {
    %c0_i32 = arith.constant 0 : i32
    %c0_i32_0 = arith.constant 0 : i32
    %c0_i32_1 = arith.constant 0 : i32
    return %c0_i32, %c0_i32_0 : i32, i32
  }
  func.func @transform_5(%arg0: i32) -> (i32, i32, i32) {
    %c0_i32 = arith.constant 0 : i32
    %c0_i32_0 = arith.constant 0 : i32
    %c0_i32_1 = arith.constant 0 : i32
    return %arg0, %c0_i32, %c0_i32_0 : i32, i32, i32
  }
}

</mosaic_0001>

<llo_original>
// kernel: tpu_custom_call.1
$region0: #{tpu_custom_call.1}
  #allocation0 [shape = 'u32[]', space=smem, size = 0x4, offset = 0x4, fixed_abs, tag = 'smem constant byte address 0x4 - core index']
  #allocation1 [shape = 'u32[72,128]{1,0:T(1,128)}', space=vmem, size = 0x9000, scoped, tag = 'internal scratch']
  %s0 = inlined_call_operand.hbm [shape: f32[2,8,1024], index: 0, kind: input, shape index: {}, may-alias: {0,5}]
  %s1 = inlined_call_operand.vmem [shape: f32[8,2], index: 1, kind: input, shape index: {}]
  %s2 = inlined_call_operand.vmem [shape: f32[1,2], index: 2, kind: input, shape index: {}]
  %s3 = inlined_call_operand.vmem [shape: f32[2,8], index: 3, kind: input, shape index: {}]
  %s4 = inlined_call_operand.vmem [shape: f32[1,8], index: 4, kind: input, shape index: {}]
  %s5 = inlined_call_operand.hbm [shape: f32[2,8,1024], index: 5, kind: output, shape index: {}, may-alias: {0,5}]
  %s6 = sld [smem:[#allocation0]]
  $region57: #{tpu_custom_call.1} parent=0
    _
  %s8 = ssub.s32 1, %s6
  %s9 = scalar_select 0, %s8, %s6
  $region1: #{tpu_custom_call.1} parent=0
    #allocation2 [shape = 'u8[65536]{0}', space=vmem, size = 0x10000, scoped, tag = 'input window, operand 0']
    #allocation3 [shape = 's32[2]{0}', space=sflag, size = 0x8, scoped, tag = 'scoped memory for tpu_custom_call.1']
    #allocation4 [shape = 's32[2]{0}', space=sflag, size = 0x8, scoped, tag = 'scoped memory for tpu_custom_call.1']
    #allocation5 [shape = 'u8[65536]{0}', space=vmem, size = 0x10000, scoped, tag = 'output window, operand 0']
    %10 = vsyncpa [#allocation3], 0
    %s11 = scalar_lea.sflag [#allocation3], 1
    %12 = vsyncpa %s11, 0
    %13 = vsyncpa [#allocation4], 0
    %s14 = scalar_lea.sflag [#allocation4], 1
    %15 = vsyncpa %s14, 0
    loop: start=0, step=1, limit=4
    $region2: #{tpu_custom_call.1} parent=1 // loop_pre_header
      _
    $region3: #{tpu_custom_call.1} parent=1 // loop_header
      %s17 = sphi 0, %s21
      %p18 = scmp.ge.s32.totalorder %s17, 4
      %s27 = sphi 0, %s29
      %s30 = sphi 0, %s27
      %s31 = sphi 0, %s30
      %s47 = sphi 0, %s31
      %s51 = sphi 0, %s51
      %s53 = sphi 0, %s51
      %s54 = sphi 0, %s53
      %s68 = sphi 0, %s54
      %s72 = sphi 0, %s72
      %s74 = sphi 0, %s72
      %s75 = sphi 0, %s74
      %s89 = sphi 0, %s75
      %s93 = sphi 0, %s93
      %s95 = sphi 0, %s93
      %s96 = sphi 0, %s95
      %s110 = sphi 0, %s96
      %s114 = sphi 0, %s114
      %s116 = sphi 0, %s114
      %s117 = sphi 0, %s116
      %s131 = sphi 0, %s117
      %s137 = sphi 0, %s139
      %s140 = sphi 0, %s137
      %s141 = sphi 0, %s140
      %s157 = sphi 0, %s141
    $region4: #{tpu_custom_call.1} parent=1 // loop_header_branch
      %20 = sbr.rel (%p18) target = $region8
    $region5: #{tpu_custom_call.1} parent=1 // loop_body
      %s22 = ssub.s32 %s17, 1
      %s23 = ssub.s32 %s17, 2
      %s24 = sadd.s32 %s17, 1
      %s25 = ssub.s32 %s17, %s24
      %p26 = scmp.eq.s32.totalorder %s25, 0
      %s28 = sadd.s32 %s27, 1
      %s29 = scalar_select %p26, %s27, %s28
      %p32 = pneg %p26
      %p33 = scmp.eq.s32.totalorder %s17, 1
      %p34 = por %p32, %p33
      %p35 = scmp.ne.s32.totalorder %s27, %s30
      %p36 = scmp.eq.s32.totalorder %s17, 0
      %p37 = por %p35, %p36
      %p38 = scmp.ne.s32.totalorder %s27, %s30
      %p39 = scmp.eq.s32.totalorder %s22, 1
      %p40 = por %p38, %p39
      %p41 = scmp.ne.s32.totalorder %s30, %s31
      %p42 = scmp.eq.s32.totalorder %s22, 0
      %p43 = por %p41, %p42
      %p44 = scmp.ne.s32.totalorder %s30, %s31
      %p45 = scmp.eq.s32.totalorder %s23, 1
      %p46 = por %p44, %p45
      %p48 = scmp.ne.s32.totalorder %s31, %s47
      %p49 = scmp.eq.s32.totalorder %s23, 0
      %p50 = por %p48, %p49
      %s52 = sadd.s32 %s51, 1
      %p55 = scmp.eq.s32.totalorder %s17, 1
      %p56 = scmp.ne.s32.totalorder %s51, %s53
      %p57 = scmp.eq.s32.totalorder %s17, 0
      %p58 = por %p56, %p57
      %p59 = scmp.ne.s32.totalorder %s51, %s53
      %p60 = scmp.eq.s32.totalorder %s22, 1
      %p61 = por %p59, %p60
      %p62 = scmp.ne.s32.totalorder %s53, %s54
      %p63 = scmp.eq.s32.totalorder %s22, 0
      %p64 = por %p62, %p63
      %p65 = scmp.ne.s32.totalorder %s53, %s54
      %p66 = scmp.eq.s32.totalorder %s23, 1
      %p67 = por %p65, %p66
      %p69 = scmp.ne.s32.totalorder %s54, %s68
      %p70 = scmp.eq.s32.totalorder %s23, 0
      %p71 = por %p69, %p70
      %s73 = sadd.s32 %s72, 1
      %p76 = scmp.eq.s32.totalorder %s17, 1
      %p77 = scmp.ne.s32.totalorder %s72, %s74
      %p78 = scmp.eq.s32.totalorder %s17, 0
      %p79 = por %p77, %p78
      %p80 = scmp.ne.s32.totalorder %s72, %s74
      %p81 = scmp.eq.s32.totalorder %s22, 1
      %p82 = por %p80, %p81
      %p83 = scmp.ne.s32.totalorder %s74, %s75
      %p84 = scmp.eq.s32.totalorder %s22, 0
      %p85 = por %p83, %p84
      %p86 = scmp.ne.s32.totalorder %s74, %s75
      %p87 = scmp.eq.s32.totalorder %s23, 1
      %p88 = por %p86, %p87
      %p90 = scmp.ne.s32.totalorder %s75, %s89
      %p91 = scmp.eq.s32.totalorder %s23, 0
      %p92 = por %p90, %p91
      %s94 = sadd.s32 %s93, 1
      %p97 = scmp.eq.s32.totalorder %s17, 1
      %p98 = scmp.ne.s32.totalorder %s93, %s95
      %p99 = scmp.eq.s32.totalorder %s17, 0
      %p100 = por %p98, %p99
      %p101 = scmp.ne.s32.totalorder %s93, %s95
      %p102 = scmp.eq.s32.totalorder %s22, 1
      %p103 = por %p101, %p102
      %p104 = scmp.ne.s32.totalorder %s95, %s96
      %p105 = scmp.eq.s32.totalorder %s22, 0
      %p106 = por %p104, %p105
      %p107 = scmp.ne.s32.totalorder %s95, %s96
      %p108 = scmp.eq.s32.totalorder %s23, 1
      %p109 = por %p107, %p108
      %p111 = scmp.ne.s32.totalorder %s96, %s110
      %p112 = scmp.eq.s32.totalorder %s23, 0
      %p113 = por %p111, %p112
      %s115 = sadd.s32 %s114, 1
      %p118 = scmp.eq.s32.totalorder %s17, 1
      %p119 = scmp.ne.s32.totalorder %s114, %s116
      %p120 = scmp.eq.s32.totalorder %s17, 0
      %p121 = por %p119, %p120
      %p122 = scmp.ne.s32.totalorder %s114, %s116
      %p123 = scmp.eq.s32.totalorder %s22, 1
      %p124 = por %p122, %p123
      %p125 = scmp.ne.s32.totalorder %s116, %s117
      %p126 = scmp.eq.s32.totalorder %s22, 0
      %p127 = por %p125, %p126
      %p128 = scmp.ne.s32.totalorder %s116, %s117
      %p129 = scmp.eq.s32.totalorder %s23, 1
      %p130 = por %p128, %p129
      %p132 = scmp.ne.s32.totalorder %s117, %s131
      %p133 = scmp.eq.s32.totalorder %s23, 0
      %p134 = por %p132, %p133
      %s135 = ssub.s32 %s17, %s24
      %p136 = scmp.eq.s32.totalorder %s135, 0
      %s138 = sadd.s32 %s137, 1
      %s139 = scalar_select %p136, %s137, %s138
      %p142 = pneg %p136
      %p143 = scmp.eq.s32.totalorder %s17, 1
      %p144 = por %p142, %p143
      %p145 = scmp.ne.s32.totalorder %s137, %s140
      %p146 = scmp.eq.s32.totalorder %s17, 0
      %p147 = por %p145, %p146
      %p148 = scmp.ne.s32.totalorder %s137, %s140
      %p149 = scmp.eq.s32.totalorder %s22, 1
      %p150 = por %p148, %p149
      %p151 = scmp.ne.s32.totalorder %s140, %s141
      %p152 = scmp.eq.s32.totalorder %s22, 0
      %p153 = por %p151, %p152
      %p154 = scmp.ne.s32.totalorder %s140, %s141
      %p155 = scmp.eq.s32.totalorder %s23, 1
      %p156 = por %p154, %p155
      %p158 = scmp.ne.s32.totalorder %s141, %s157
      %p159 = scmp.eq.s32.totalorder %s23, 0
      %p160 = por %p158, %p159
      %p161 = scmp.le.s32.totalorder 1, %s17
      %p162 = scmp.lt.s32.totalorder %s17, 3
      %p163 = pnand %p161, %p162
      %p164 = pneg %p163
      // Predicated region
      $region9: #{tpu_custom_call.1} parent=5 // pred_check
        _
      $region10: #{tpu_custom_call.1} parent=5 // pred_check_branch
        %166 = sbr.rel (%p163) target = $region12
      $region11: #{tpu_custom_call.1} parent=5 // pred_region
        %s167 = ssub.s32 %s17, 1
        // Predicated region
        $region13: #{tpu_custom_call.1} parent=11 // pred_check
          %p168 = pneg %p64
        $region14: #{tpu_custom_call.1} parent=11 // pred_check_branch
          %170 = sbr.rel (%p168) target = $region16
        $region15: #{tpu_custom_call.1} parent=11 // pred_region
          _
        $region16: #{tpu_custom_call.1} parent=11 // pred_fallthru
          _
        // Predicated region
        $region17: #{tpu_custom_call.1} parent=11 // pred_check
          %p171 = pneg %p85
        $region18: #{tpu_custom_call.1} parent=11 // pred_check_branch
          %173 = sbr.rel (%p171) target = $region20
        $region19: #{tpu_custom_call.1} parent=11 // pred_region
          _
        $region20: #{tpu_custom_call.1} parent=11 // pred_fallthru
          _
        // Predicated region
        $region21: #{tpu_custom_call.1} parent=11 // pred_check
          %p174 = pneg %p106
        $region22: #{tpu_custom_call.1} parent=11 // pred_check_branch
          %176 = sbr.rel (%p174) target = $region24
        $region23: #{tpu_custom_call.1} parent=11 // pred_region
          _
        $region24: #{tpu_custom_call.1} parent=11 // pred_fallthru
          _
        // Predicated region
        $region25: #{tpu_custom_call.1} parent=11 // pred_check
          %p177 = pneg %p127
        $region26: #{tpu_custom_call.1} parent=11 // pred_check_branch
          %179 = sbr.rel (%p177) target = $region28
        $region27: #{tpu_custom_call.1} parent=11 // pred_region
          _
        $region28: #{tpu_custom_call.1} parent=11 // pred_fallthru
          _
      $region12: #{tpu_custom_call.1} parent=5 // pred_fallthru
        _
      %p180 = scmp.lt.s32.totalorder %s17, 2
      // Predicated region
      $region29: #{tpu_custom_call.1} parent=5 // pred_check
        %p181 = pneg %p180
      $region30: #{tpu_custom_call.1} parent=5 // pred_check_branch
        %183 = sbr.rel (%p181) target = $region32
      $region31: #{tpu_custom_call.1} parent=5 // pred_region
        // Predicated region
        $region33: #{tpu_custom_call.1} parent=31 // pred_check
          %p184 = pneg %p37
        $region34: #{tpu_custom_call.1} parent=31 // pred_check_branch
          %186 = sbr.rel (%p184) target = $region36
        $region35: #{tpu_custom_call.1} parent=31 // pred_region
          %s187 = sand.u32 %s27, 1
          %s188 = scalar_lea.sflag [#allocation3], %s187
          %s189 = sand.u32 %s27, 1
          %s190 = smul.addr %s189, 64
          %s191 = scalar_lea.vmem [#allocation2], %s190
          %193 = vsyncadd %s188, 0
          %s194 = smul.addr %s17, 8
          %s195 = smul.addr %s194, 8
          %s196 = scalar_lea.hbm %s0, %s195
          %s198 = sshll.u32 %s196, 4
          %s199 = int_to_ptr.hbm [resolvable:$true] %s198
          %s200 = sshll.u32 %s191, 4
          %s201 = int_to_ptr.vmem [resolvable:$true] %s200
          %203 = dma.hbm_to_vmem [thread:$0]  %s199, 1024, %s201, %s188
        $region36: #{tpu_custom_call.1} parent=31 // pred_fallthru
          _
      $region32: #{tpu_custom_call.1} parent=5 // pred_fallthru
        _
      %p204 = scmp.le.s32.totalorder 1, %s17
      %p205 = scmp.lt.s32.totalorder %s17, 3
      %p206 = pnand %p204, %p205
      %p207 = pneg %p206
      // Predicated region
      $region37: #{tpu_custom_call.1} parent=5 // pred_check
        _
      $region38: #{tpu_custom_call.1} parent=5 // pred_check_branch
        %209 = sbr.rel (%p206) target = $region40
      $region39: #{tpu_custom_call.1} parent=5 // pred_region
        %s210 = ssub.s32 %s17, 1
        %s211 = sand.u32 %s30, 1
        %s212 = scalar_lea.sflag [#allocation3], %s211
        %s213 = sand.u32 %s30, 1
        %s214 = smul.addr %s213, 64
        %s215 = scalar_lea.vmem [#allocation2], %s214
        // Predicated region
        $region41: #{tpu_custom_call.1} parent=39 // pred_check
          %p216 = pneg %p43
        $region42: #{tpu_custom_call.1} parent=39 // pred_check_branch
          %218 = sbr.rel (%p216) target = $region44
        $region43: #{tpu_custom_call.1} parent=39 // pred_region
          %220 = dma.done %s212, 1024
        $region44: #{tpu_custom_call.1} parent=39 // pred_fallthru
          _
        %s221 = sand.u32 %s30, 1
        %s222 = scalar_lea.sflag [#allocation3], %s221
        %s223 = sand.u32 %s30, 1
        %s224 = smul.addr %s223, 64
        %s225 = scalar_lea.vmem [#allocation2], %s224
        %p226 = pneg %p43
        %p227 = pneg %p40
        %p228 = pneg %p64
        %p229 = pneg %p61
        %p230 = pneg %p85
        %p231 = pneg %p82
        %p232 = pneg %p106
        %p233 = pneg %p103
        %p234 = pneg %p127
        %p235 = pneg %p124
        %p236 = pneg %p153
        %p237 = pneg %p150
        %s238 = sand.u32 %s140, 1
        %s239 = scalar_lea.sflag [#allocation4], %s238
        %s240 = sand.u32 %s140, 1
        %s241 = smul.addr %s240, 64
        %s242 = scalar_lea.vmem [#allocation5], %s241
        %v243 = vld [vmem:[%s215] sm:$0xff]
        %v244 = vld [vmem:[%s215 + $0x8] sm:$0xff]
        %v245 = vld [vmem:[%s215 + $0x10] sm:$0xff]
        %v246 = vld [vmem:[%s215 + $0x18] sm:$0xff]
        %v247 = vld [vmem:[%s215 + $0x20] sm:$0xff]
        %v248 = vld [vmem:[%s215 + $0x28] sm:$0xff]
        %v249 = vld [vmem:[%s215 + $0x30] sm:$0xff]
        %v250 = vld [vmem:[%s215 + $0x38] sm:$0xff]
        %v251 = vadd.f32 %v243, 0.0
        %v252 = vadd.f32 %v244, 0.0
        %v253 = vadd.f32 %v245, 0.0
        %v254 = vadd.f32 %v246, 0.0
        %v255 = vadd.f32 %v247, 0.0
        %v256 = vadd.f32 %v248, 0.0
        %v257 = vadd.f32 %v249, 0.0
        %v258 = vadd.f32 %v250, 0.0
        %v259 = vadd.f32 %v251, %v252
        %v260 = vadd.f32 %v259, %v253
        %v261 = vadd.f32 %v260, %v254
        %v262 = vadd.f32 %v261, %v255
        %v263 = vadd.f32 %v262, %v256
        %v264 = vadd.f32 %v263, %v257
        %v265 = vadd.f32 %v264, %v258
        %266 = vadd.xlane.f32.xlu0 %v265
        %v267 = vpop.xlane.xlu0 %266
        %v268 = vld [vmem:[%s1] sm:$0xff]
        %v269 = vld [vmem:[%s2] sm:$0x1]
        %v271 = vlaneseq
        %v272 = vand.u32 %v271, 127
        %v273 = vperm.slane %v267, %v272
        %vm274 = vcmask 64512
        %v275 = vsel %vm274, %v273, 0
        %277 = vmatpush.msra.mxu0 0.0
        %278 = vmatpush.msra.mxu0 0.0
        %279 = vmatpush.msra.mxu0 0.0
        %280 = vmatpush.msra.mxu0 0.0
        %281 = vmatpush.msra.mxu0 0.0
        %282 = vmatpush.msra.mxu0 0.0
        %283 = vmatpush.msra.mxu0 0.0
        %284 = vmatpush.msra.mxu0 0.0
        %285 = vmatpush.msra.mxu0 0.0
        %286 = vmatpush.msra.mxu0 0.0
        %287 = vmatpush.msra.mxu0 0.0
        %288 = vmatpush.msra.mxu0 0.0
        %289 = vmatpush.msra.mxu0 0.0
        %290 = vmatpush.msra.mxu0 0.0
        %291 = vmatpush.msra.mxu0 0.0
        %292 = vmatpush.msra.mxu0 %v268
        %293 = vmatmul.f32.gmra.mxu0 %v275
        %v294 = vpop.f32.mrf.mxu0
        %v295 = vadd.f32 %v269, %v294
        %296 = vdwg.mxu0
        %v297 = vmax.f32 %v295, 0.0
        %v298 = vld [vmem:[%s3] sm:$0x3]
        %v299 = vld [vmem:[%s4] sm:$0x1]
        %vm300 = vcmask 15360
        %v302 = vsel %vm300, %v297, 0
        %vm304 = vcmask 1041408
        %v306 = vsel %vm304, %v298, 0
        %308 = vmatpush.msra.mxu0 0.0
        %309 = vmatpush.msra.mxu0 0.0
        %310 = vmatpush.msra.mxu0 0.0
        %311 = vmatpush.msra.mxu0 0.0
        %312 = vmatpush.msra.mxu0 0.0
        %313 = vmatpush.msra.mxu0 0.0
        %314 = vmatpush.msra.mxu0 0.0
        %315 = vmatpush.msra.mxu0 0.0
        %316 = vmatpush.msra.mxu0 0.0
        %317 = vmatpush.msra.mxu0 0.0
        %318 = vmatpush.msra.mxu0 0.0
        %319 = vmatpush.msra.mxu0 0.0
        %320 = vmatpush.msra.mxu0 0.0
        %321 = vmatpush.msra.mxu0 0.0
        %322 = vmatpush.msra.mxu0 0.0
        %323 = vmatpush.msra.mxu0 %v306
        %324 = vmatmul.f32.gmra.mxu0 %v302
        %v325 = vpop.f32.mrf.mxu0
        %v326 = vadd.f32 %v299, %v325
        %327 = vdwg.mxu0
        %v328 = vxor.u32 %v326, 2147483648
        %v329 = vmul.f32 %v328, 1.442695
        %v330 = vpow.pop %v329
        %v331 = vadd.f32 %v330, 1.0
        %v332 = vrcp.pop %v331
        %v333 = vmul.f32 %v331, %v332
        %v334 = vsub.f32 1.0, %v333
        %v335 = vmul.f32 %v332, %v334
        %v336 = vadd.f32 %v332, %v335
        %vm337 = vweird.f32 %v331
        %vm338 = vweird.f32 %v332
        %vm339 = vmor %vm337, %vm338
        %v340 = vsel %vm339, %v332, %v336
        %v341 = vand.u32 2147483647, %v331
        %vm342 = vcmp.eq.f32.partialorder %v341, 8.507059e+37
        %v343 = vand.u32 %v331, 2147483648
        %v344 = vor.u32 1.1754944e-38, %v343
        %v345 = vsel %vm342, %v344, %v340
        %v346 = vmul.f32 1.0, %v345
        %v347 = vperm.slane %v346, 0
        %v348 = vlaneseq
        %v349 = vshrl.u32 %v348, 7
        %351 = vset.pattern.permute.xlu0 %v349
        %352 = vperm.xlu0 %351, %v347
        %v353 = vpop.permute.xlu0 %352
        %v354 = vmul.f32 %v243, %v353
        %v355 = vmul.f32 %v244, %v353
        %v356 = vmul.f32 %v245, %v353
        %v357 = vmul.f32 %v246, %v353
        %v358 = vmul.f32 %v247, %v353
        %v359 = vmul.f32 %v248, %v353
        %v360 = vmul.f32 %v249, %v353
        %v361 = vmul.f32 %v250, %v353
        %362 = vst [vmem:[%s242] sm:$0xff] %v354
        %363 = vst [vmem:[%s242 + $0x8] sm:$0xff] %v355
        %364 = vst [vmem:[%s242 + $0x10] sm:$0xff] %v356
        %365 = vst [vmem:[%s242 + $0x18] sm:$0xff] %v357
        %366 = vst [vmem:[%s242 + $0x20] sm:$0xff] %v358
        %367 = vst [vmem:[%s242 + $0x28] sm:$0xff] %v359
        %368 = vst [vmem:[%s242 + $0x30] sm:$0xff] %v360
        %369 = vst [vmem:[%s242 + $0x38] sm:$0xff] %v361
        %s370 = sand.u32 %s140, 1
        %s371 = scalar_lea.sflag [#allocation4], %s370
        %s372 = sand.u32 %s140, 1
        %s373 = smul.addr %s372, 64
        %s374 = scalar_lea.vmem [#allocation5], %s373
        // Predicated region
        $region45: #{tpu_custom_call.1} parent=39 // pred_check
          %p375 = pneg %p150
        $region46: #{tpu_custom_call.1} parent=39 // pred_check_branch
          %377 = sbr.rel (%p375) target = $region48
        $region47: #{tpu_custom_call.1} parent=39 // pred_region
          %379 = vsyncadd %s371, 0
          %s380 = smul.addr %s22, 8
          %s381 = smul.addr %s380, 8
          %s382 = scalar_lea.hbm %s5, %s381
          %s384 = sshll.u32 %s374, 4
          %s385 = int_to_ptr.vmem [resolvable:$true] %s384
          %s386 = sshll.u32 %s382, 4
          %s387 = int_to_ptr.hbm [resolvable:$true] %s386
          %389 = dma.vmem_to_hbm [thread:$0]  %s385, 1024, %s387, %s371
        $region48: #{tpu_custom_call.1} parent=39 // pred_fallthru
          _
      $region40: #{tpu_custom_call.1} parent=5 // pred_fallthru
        _
      %p390 = scmp.le.s32.totalorder 2, %s17
      // Predicated region
      $region49: #{tpu_custom_call.1} parent=5 // pred_check
        %p391 = pneg %p390
      $region50: #{tpu_custom_call.1} parent=5 // pred_check_branch
        %393 = sbr.rel (%p391) target = $region52
      $region51: #{tpu_custom_call.1} parent=5 // pred_region
        %s394 = ssub.s32 %s17, 2
        // Predicated region
        $region53: #{tpu_custom_call.1} parent=51 // pred_check
          %p395 = pneg %p156
        $region54: #{tpu_custom_call.1} parent=51 // pred_check_branch
          %397 = sbr.rel (%p395) target = $region56
        $region55: #{tpu_custom_call.1} parent=51 // pred_region
          %s398 = sand.u32 %s141, 1
          %s399 = scalar_lea.sflag [#allocation4], %s398
          %s400 = sand.u32 %s141, 1
          %s401 = smul.addr %s400, 64
          %s402 = scalar_lea.vmem [#allocation5], %s401
          %404 = dma.done %s399, 1024
        $region56: #{tpu_custom_call.1} parent=51 // pred_fallthru
          _
      $region52: #{tpu_custom_call.1} parent=5 // pred_fallthru
        _
    $region6: #{tpu_custom_call.1} parent=1 // loop_footer
      %s21 = sadd.s32 1, %s17
    $region7: #{tpu_custom_call.1} parent=1 // loop_footer_branch
      %16 = sbr.rel target = $region3
    $region8: #{tpu_custom_call.1} parent=1 // loop_exit
      _
    %405 = vsyncpa [#allocation3], 1
    %s406 = scalar_lea.sflag [#allocation3], 1
    %407 = vsyncpa %s406, 1
    %408 = vsyncpa [#allocation4], 1
    %s409 = scalar_lea.sflag [#allocation4], 1
    %410 = vsyncpa %s409, 1

</llo_original>
